<compile_context>
chip_gen: v7x
topology: tpu7x:2x2x1
jax: 0.10.0
libtpu: 0.0.40
codegen_flags: <defaults>
</compile_context>

<pallas_src>
import functools
import math

import numpy as np
import jax
import jax.numpy as jnp
from jax.experimental import pallas as pl
from jax.experimental.pallas import tpu as pltpu


def _group_norm_kernel(x_ref, a_ref, aw_ref, b_ref, o_ref, *, cpg, eps):
    """One lane-dense (tm, C) tile: MXU segmented stats + one fused scale/shift pass."""
    xf = x_ref[...].astype(jnp.float32)                               # (tm, C)
    a = a_ref[...]                                                    # (C, G) 0/1 indicator
    # Per-row, per-group sum and sum-of-squares on the (otherwise idle) MXU.
    s = jnp.dot(xf, a, preferred_element_type=jnp.float32)            # (tm, G)
    q = jnp.dot(xf * xf, a, preferred_element_type=jnp.float32)       # (tm, G)
    mean = s * (1.0 / cpg)                                            # (tm, G)
    var = (q - s * mean) * (1.0 / (cpg - 1))                          # unbiased (torch .var())
    var = jnp.maximum(var, 0.0)                                       # guard fp cancellation
    inv_std = jax.lax.rsqrt(var + eps)                                # EUP rsqrt
    # Expand per-group coefficients back to channels; weight folded into aw = A^T * w.
    aw = aw_ref[...]                                                  # (G, C)
    scale = jnp.dot(inv_std, aw, preferred_element_type=jnp.float32)              # (tm, C)
    shift = b_ref[...] - jnp.dot(mean * inv_std, aw, preferred_element_type=jnp.float32)
    o_ref[...] = (xf * scale + shift).astype(o_ref.dtype)


def _vmem_capacity_bytes():
    try:
        return int(pltpu.get_tpu_info().vmem_capacity_bytes)
    except Exception:
        return 64 * 1024 * 1024   # conservative (v7x-sized) fallback


def _round_up(v, mult):
    return ((v + mult - 1) // mult) * mult


def _pick_block_rows(m, c, itemsize, target_bytes, sub):
    """As many rows as the per-block byte budget allows (multiple of `sub`), but split into
    >= 2 grid blocks when possible so the v7x 2-TensorCore 'parallel' axis stays balanced."""
    rows = max(sub, (target_bytes // max(1, c * itemsize)) // sub * sub)
    if m > sub:
        rows = min(rows, _round_up((m + 1) // 2, sub))
    rows = min(rows, _round_up(m, sub))
    return max(sub, rows)


def group_norm(x, weight=None, bias=None, *, num_groups, eps=1e-8,
               domain_wise=False, block_rows=None):
    """Channels-last GroupNorm matching the PyTorch module (domain_wise=False path)."""
    if domain_wise:
        # TODO(synk): domain_wise=True (stats over all spatial positions per (batch, group))
        # needs a two-pass / accumulator kernel; not implemented here.
        raise NotImplementedError("domain_wise=True is not implemented in the Pallas kernel")

    orig_shape = x.shape
    C = orig_shape[-1]
    assert C % num_groups == 0, "num_channels must be divisible by num_groups"
    cpg = C // num_groups
    assert cpg >= 2, "unbiased variance (torch .var() default) needs >= 2 channels per group"

    if weight is None:
        weight = jnp.ones((C,), dtype=jnp.float32)
    if bias is None:
        bias = jnp.zeros((C,), dtype=jnp.float32)
    weight = weight.astype(jnp.float32)
    bias = bias.astype(jnp.float32)

    m = math.prod(orig_shape[:-1]) if len(orig_shape) > 1 else 1
    x2 = x.reshape(m, C)

    # Lane packing: for C < 128 pack k = 128 // C consecutive rows into one lane-dense row
    # (free row-major reshape).  Equivalent to GroupNorm with C' = k*C, G' = k*G and tiled
    # affine params; keeps loads/stores unmasked and vregs full.
    k = 1
    if C < 128 and 128 % C == 0:
        kk = 128 // C
        if m % kk == 0:
            k = kk
    Cp, Gp, mp = C * k, num_groups * k, m // k
    if k > 1:
        x2 = x2.reshape(mp, Cp)
        w_row = jnp.tile(weight, k).reshape(1, Cp)
        b_row = jnp.tile(bias, k).reshape(1, Cp)
    else:
        w_row = weight.reshape(1, Cp)
        b_row = bias.reshape(1, Cp)

    # Constant group indicator A[c, g] = (c // cpg == g) and weight-folded expansion A^T * w.
    ch = np.arange(Cp)
    a_np = (ch[:, None] // cpg == np.arange(Gp)[None, :]).astype(np.float32)
    a_mat = jnp.asarray(a_np)                       # (Cp, Gp)
    aw_mat = a_mat.T * w_row                        # (Gp, Cp)

    # Generation-aware tile sizing: v5e/v6e (128 MiB VMEM) get bigger blocks and a higher
    # scoped-VMEM limit; v7x (64 MiB VMEM per TC) gets smaller blocks and a tighter limit.
    itemsize = jnp.dtype(x.dtype).itemsize
    sub = max(8, 32 // max(1, itemsize))            # sublane tile: 8 f32 / 16 bf16 / 32 int8
    if _vmem_capacity_bytes() >= 100 * 1024 * 1024:
        target_bytes, vmem_limit = 4 * 1024 * 1024, 64 * 1024 * 1024
    else:
        target_bytes, vmem_limit = 2 * 1024 * 1024, 40 * 1024 * 1024

    if block_rows is None:
        tm = _pick_block_rows(mp, Cp, itemsize, target_bytes, sub)
    else:
        tm = max(sub, (int(block_rows) // sub) * sub)
        tm = min(tm, _round_up(mp, sub))

    # cdiv grid with NO wrapper-side pad / slice: rows are independent, so the ragged last
    # block's out-of-bounds rows hold garbage that is computed on but never stored (masked).
    grid = (pl.cdiv(mp, tm),)

    kernel = functools.partial(_group_norm_kernel, cpg=cpg, eps=float(eps))

    out = pl.pallas_call(
        kernel,
        out_shape=jax.ShapeDtypeStruct((mp, Cp), x.dtype),
        grid_spec=pltpu.PrefetchScalarGridSpec(
            num_scalar_prefetch=0,
            grid=grid,
            in_specs=[
                pl.BlockSpec((tm, Cp), lambda i: (i, 0)),    # lane-dense input tile
                pl.BlockSpec((Cp, Gp), lambda i: (0, 0)),    # resident group indicator
                pl.BlockSpec((Gp, Cp), lambda i: (0, 0)),    # resident A^T * weight
                pl.BlockSpec((1, Cp), lambda i: (0, 0)),     # resident bias row
            ],
            out_specs=pl.BlockSpec((tm, Cp), lambda i: (i, 0)),   # lane-dense output tile
        ),
        compiler_params=pltpu.CompilerParams(
            dimension_semantics=("parallel",),               # megacore / 2-TC sharding
            vmem_limit_bytes=vmem_limit,
        ),
    )(x2, a_mat, aw_mat, b_row)

    return out.reshape(orig_shape)                           # free row-major reinterpretation


def _group_norm_reference(x, weight, bias, *, num_groups, eps=1e-8):
    C = x.shape[-1]
    c = C // num_groups
    xg = x.reshape(*x.shape[:-1], num_groups, c)
    mean = jnp.mean(xg, axis=-1, keepdims=True)
    var = jnp.var(xg, axis=-1, keepdims=True, ddof=1)   # unbiased, matches torch .var()
    xn = (xg - mean) / jnp.sqrt(var + eps)
    xn = xn.reshape(x.shape)
    return xn * weight + bias


if __name__ == "__main__":
    key = jax.random.PRNGKey(0)
    kx, kw, kb = jax.random.split(key, 3)

    # channels-last input like factformer: (batch, h, w, channels); 17 -> ragged row count
    batch, h, w, channels = 2, 17, 16, 32
    num_groups = 4
    x = jax.random.normal(kx, (batch, h, w, channels), dtype=jnp.float32)
    weight = jax.random.normal(kw, (channels,), dtype=jnp.float32)
    bias = jax.random.normal(kb, (channels,), dtype=jnp.float32)

    ref = _group_norm_reference(x, weight, bias, num_groups=num_groups, eps=1e-8)

    # 1) auto-sized tile (lane-packed: C=32 -> 128 lanes; >= 2 grid blocks)
    out = jax.block_until_ready(group_norm(x, weight, bias, num_groups=num_groups, eps=1e-8))
    assert out.shape == x.shape
    assert jnp.allclose(out, ref, atol=1e-4, rtol=1e-4), float(jnp.max(jnp.abs(out - ref)))

    # 2) explicit small tile -> multi-step grid + ragged (masked) last block path
    out2 = jax.block_until_ready(
        group_norm(x, weight, bias, num_groups=num_groups, eps=1e-8, block_rows=48))
    assert jnp.allclose(out2, ref, atol=1e-4, rtol=1e-4)

    print("KERNEL_OK")
</pallas_src>

<mosaic_0001>
module attributes {stable_mosaic.version = 11 : i64} {
  func.func @_group_norm_kernel(%arg0: i32, %arg1: memref<72x128xf32, #tpu.memory_space<vmem>>, %arg2: memref<128x16xf32, #tpu.memory_space<vmem>>, %arg3: memref<16x128xf32, #tpu.memory_space<vmem>>, %arg4: memref<1x128xf32, #tpu.memory_space<vmem>>, %arg5: memref<72x128xf32, #tpu.memory_space<vmem>>) attributes {dimension_semantics = [#tpu.dimension_semantics<parallel>], iteration_bounds = array<i64: 2>, scalar_prefetch = 0 : i64, scratch_operands = 0 : i64, tpu.core_type = #tpu.core_type<tc>, window_params = [{transform_indices = @transform_0, window_bounds = array<i64: 72, 128>}, {pipeline_mode = #tpu.pipeline_mode<synchronous>, transform_indices = @transform_1, window_bounds = array<i64: 128, 16>}, {pipeline_mode = #tpu.pipeline_mode<synchronous>, transform_indices = @transform_2, window_bounds = array<i64: 16, 128>}, {pipeline_mode = #tpu.pipeline_mode<synchronous>, transform_indices = @transform_3, window_bounds = array<i64: 1, 128>}, {transform_indices = @transform_4, window_bounds = array<i64: 72, 128>}]} {
    %c0 = arith.constant 0 : index
    %c0_0 = arith.constant 0 : index
    %0 = vector.load %arg1[%c0, %c0_0] : memref<72x128xf32, #tpu.memory_space<vmem>>, vector<72x128xf32>
    %c0_1 = arith.constant 0 : index
    %c0_2 = arith.constant 0 : index
    %1 = vector.load %arg2[%c0_1, %c0_2] : memref<128x16xf32, #tpu.memory_space<vmem>>, vector<128x16xf32>
    %cst = arith.constant dense<0.000000e+00> : vector<72x16xf32>
    %2 = tpu.matmul %0, %1, %cst {dimension_numbers = #tpu.dot_dimension_numbers<[1], [0], [0], [1], [0, 0, 1, 1], [], []>} : vector<72x128xf32>, vector<128x16xf32>, vector<72x16xf32> -> vector<72x16xf32>
    %3 = arith.mulf %0, %0 : vector<72x128xf32>
    %cst_3 = arith.constant dense<0.000000e+00> : vector<72x16xf32>
    %4 = tpu.matmul %3, %1, %cst_3 {dimension_numbers = #tpu.dot_dimension_numbers<[1], [0], [0], [1], [0, 0, 1, 1], [], []>} : vector<72x128xf32>, vector<128x16xf32>, vector<72x16xf32> -> vector<72x16xf32>
    %cst_4 = arith.constant 1.250000e-01 : f32
    %5 = vector.broadcast %cst_4 : f32 to vector<72x16xf32>
    %6 = arith.mulf %2, %5 : vector<72x16xf32>
    %7 = arith.mulf %2, %6 : vector<72x16xf32>
    %8 = arith.subf %4, %7 : vector<72x16xf32>
    %cst_5 = arith.constant 0.142857149 : f32
    %9 = vector.broadcast %cst_5 : f32 to vector<72x16xf32>
    %10 = arith.mulf %8, %9 : vector<72x16xf32>
    %cst_6 = arith.constant 0.000000e+00 : f32
    %11 = vector.broadcast %cst_6 : f32 to vector<72x16xf32>
    %12 = arith.maximumf %10, %11 : vector<72x16xf32>
    %cst_7 = arith.constant 9.99999993E-9 : f32
    %13 = vector.broadcast %cst_7 : f32 to vector<72x16xf32>
    %14 = arith.addf %12, %13 : vector<72x16xf32>
    %15 = math.rsqrt %14 : vector<72x16xf32>
    %c0_8 = arith.constant 0 : index
    %c0_9 = arith.constant 0 : index
    %16 = vector.load %arg3[%c0_8, %c0_9] : memref<16x128xf32, #tpu.memory_space<vmem>>, vector<16x128xf32>
    %cst_10 = arith.constant dense<0.000000e+00> : vector<72x128xf32>
    %17 = tpu.matmul %15, %16, %cst_10 {dimension_numbers = #tpu.dot_dimension_numbers<[1], [0], [0], [1], [0, 0, 1, 1], [], []>} : vector<72x16xf32>, vector<16x128xf32>, vector<72x128xf32> -> vector<72x128xf32>
    %c0_11 = arith.constant 0 : index
    %c0_12 = arith.constant 0 : index
    %18 = vector.load %arg4[%c0_11, %c0_12] : memref<1x128xf32, #tpu.memory_space<vmem>>, vector<1x128xf32>
    %19 = arith.mulf %6, %15 : vector<72x16xf32>
    %cst_13 = arith.constant dense<0.000000e+00> : vector<72x128xf32>
    %20 = tpu.matmul %19, %16, %cst_13 {dimension_numbers = #tpu.dot_dimension_numbers<[1], [0], [0], [1], [0, 0, 1, 1], [], []>} : vector<72x16xf32>, vector<16x128xf32>, vector<72x128xf32> -> vector<72x128xf32>
    %21 = vector.broadcast %18 : vector<1x128xf32> to vector<72x128xf32>
    %22 = arith.subf %21, %20 : vector<72x128xf32>
    %23 = arith.mulf %0, %17 : vector<72x128xf32>
    %24 = arith.addf %23, %22 : vector<72x128xf32>
    %c0_14 = arith.constant 0 : index
    %c0_15 = arith.constant 0 : index
    %25 = vector.load %arg5[%c0_14, %c0_15] : memref<72x128xf32, #tpu.memory_space<vmem>>, vector<72x128xf32>
    tpu.vector_store %arg5[%c0_14, %c0_15], %24 {strides = array<i32>} : memref<72x128xf32, #tpu.memory_space<vmem>>, vector<72x128xf32>,
    return
  }
  func.func @transform_0(%arg0: i32) -> (i32, i32) {
    %c0_i32 = arith.constant 0 : i32
    %c0_i32_0 = arith.constant 0 : i32
    return %arg0, %c0_i32 : i32, i32
  }
  func.func @transform_1(%arg0: i32) -> (i32, i32) {
    %c0_i32 = arith.constant 0 : i32
    %c0_i32_0 = arith.constant 0 : i32
    %c0_i32_1 = arith.constant 0 : i32
    return %c0_i32, %c0_i32_0 : i32, i32
  }
  func.func @transform_2(%arg0: i32) -> (i32, i32) {
    %c0_i32 = arith.constant 0 : i32
    %c0_i32_0 = arith.constant 0 : i32
    %c0_i32_1 = arith.constant 0 : i32
    return %c0_i32, %c0_i32_0 : i32, i32
  }
  func.func @transform_3(%arg0: i32) -> (i32, i32) {
    %c0_i32 = arith.constant 0 : i32
    %c0_i32_0 = arith.constant 0 : i32
    %c0_i32_1 = arith.constant 0 : i32
    return %c0_i32, %c0_i32_0 : i32, i32
  }
  func.func @transform_4(%arg0: i32) -> (i32, i32) {
    %c0_i32 = arith.constant 0 : i32
    %c0_i32_0 = arith.constant 0 : i32
    return %arg0, %c0_i32 : i32, i32
  }
}

</mosaic_0001>

<llo_original>
// kernel: tpu_custom_call.1
$region0: #{tpu_custom_call.1}
  #allocation0 [shape = 'u32[]', space=smem, size = 0x4, offset = 0x4, fixed_abs, tag = 'smem constant byte address 0x4 - core index']
  #allocation1 [shape = 'u32[144,128]{1,0:T(1,128)}', space=vmem, size = 0x12000, scoped, tag = 'internal scratch']
  %s0 = inlined_call_operand.vmem [shape: f32[136,128], index: 0, kind: input, shape index: {}]
  %s1 = inlined_call_operand.vmem [shape: f32[128,16], index: 1, kind: input, shape index: {}]
  %s2 = inlined_call_operand.hbm [shape: f32[16,128], index: 2, kind: input, shape index: {}]
  %s3 = inlined_call_operand.vmem [shape: f32[1,128], index: 3, kind: input, shape index: {}]
  %s4 = inlined_call_operand.hbm [shape: f32[136,128], index: 4, kind: output, shape index: {}]
  %s5 = sld [smem:[#allocation0]]
  $region53: #{tpu_custom_call.1} parent=0
    _
  %s7 = ssub.s32 1, %s5
  %s8 = scalar_select 0, %s7, %s5
  $region1: #{tpu_custom_call.1} parent=0
    #allocation2 [shape = 'u8[8192]{0}', space=vmem, size = 0x2000, scoped, tag = 'input window, operand 2, single buffered']
    #allocation3 [shape = 's32[2]{0}', space=sflag, size = 0x8, scoped, tag = 'scoped memory for tpu_custom_call.1']
    #allocation4 [shape = 's32[2]{0}', space=sflag, size = 0x8, scoped, tag = 'scoped memory for tpu_custom_call.1']
    #allocation5 [shape = 'u8[73728]{0}', space=vmem, size = 0x12000, scoped, tag = 'output window, operand 0']
    %9 = vsyncpa [#allocation3], 0
    %10 = vsyncpa [#allocation4], 0
    %s11 = scalar_lea.sflag [#allocation4], 1
    %12 = vsyncpa %s11, 0
    loop: start=0, step=1, limit=4
    $region2: #{tpu_custom_call.1} parent=1 // loop_pre_header
      _
    $region3: #{tpu_custom_call.1} parent=1 // loop_header
      %s14 = sphi 0, %s18
      %p15 = scmp.ge.s32.totalorder %s14, 4
      %s24 = sphi 0, %s26
      %s27 = sphi 0, %s24
      %s28 = sphi 0, %s27
      %s44 = sphi 0, %s28
      %s48 = sphi 0, %s48
      %s50 = sphi 0, %s48
      %s51 = sphi 0, %s50
      %s65 = sphi 0, %s51
      %s69 = sphi 0, %s69
      %s71 = sphi 0, %s69
      %s72 = sphi 0, %s71
      %s86 = sphi 0, %s72
      %s90 = sphi 0, %s90
      %s92 = sphi 0, %s90
      %s93 = sphi 0, %s92
      %s107 = sphi 0, %s93
      %s113 = sphi 0, %s115
      %s116 = sphi 0, %s113
      %s117 = sphi 0, %s116
      %s133 = sphi 0, %s117
    $region4: #{tpu_custom_call.1} parent=1 // loop_header_branch
      %17 = sbr.rel (%p15) target = $region8
    $region5: #{tpu_custom_call.1} parent=1 // loop_body
      %s19 = ssub.s32 %s14, 1
      %s20 = ssub.s32 %s14, 2
      %s21 = sadd.s32 %s14, 1
      %s22 = ssub.s32 %s14, %s21
      %p23 = scmp.eq.s32.totalorder %s22, 0
      %s25 = sadd.s32 %s24, 1
      %s26 = scalar_select %p23, %s24, %s25
      %p29 = pneg %p23
      %p30 = scmp.eq.s32.totalorder %s14, 1
      %p31 = por %p29, %p30
      %p32 = scmp.ne.s32.totalorder %s24, %s27
      %p33 = scmp.eq.s32.totalorder %s14, 0
      %p34 = por %p32, %p33
      %p35 = scmp.ne.s32.totalorder %s24, %s27
      %p36 = scmp.eq.s32.totalorder %s19, 1
      %p37 = por %p35, %p36
      %p38 = scmp.ne.s32.totalorder %s27, %s28
      %p39 = scmp.eq.s32.totalorder %s19, 0
      %p40 = por %p38, %p39
      %p41 = scmp.ne.s32.totalorder %s27, %s28
      %p42 = scmp.eq.s32.totalorder %s20, 1
      %p43 = por %p41, %p42
      %p45 = scmp.ne.s32.totalorder %s28, %s44
      %p46 = scmp.eq.s32.totalorder %s20, 0
      %p47 = por %p45, %p46
      %s49 = sadd.s32 %s48, 1
      %p52 = scmp.eq.s32.totalorder %s14, 1
      %p53 = scmp.ne.s32.totalorder %s48, %s50
      %p54 = scmp.eq.s32.totalorder %s14, 0
      %p55 = por %p53, %p54
      %p56 = scmp.ne.s32.totalorder %s48, %s50
      %p57 = scmp.eq.s32.totalorder %s19, 1
      %p58 = por %p56, %p57
      %p59 = scmp.ne.s32.totalorder %s50, %s51
      %p60 = scmp.eq.s32.totalorder %s19, 0
      %p61 = por %p59, %p60
      %p62 = scmp.ne.s32.totalorder %s50, %s51
      %p63 = scmp.eq.s32.totalorder %s20, 1
      %p64 = por %p62, %p63
      %p66 = scmp.ne.s32.totalorder %s51, %s65
      %p67 = scmp.eq.s32.totalorder %s20, 0
      %p68 = por %p66, %p67
      %s70 = sadd.s32 %s69, 1
      %p73 = scmp.eq.s32.totalorder %s14, 1
      %p74 = scmp.ne.s32.totalorder %s69, %s71
      %p75 = scmp.eq.s32.totalorder %s14, 0
      %p76 = por %p74, %p75
      %p77 = scmp.ne.s32.totalorder %s69, %s71
      %p78 = scmp.eq.s32.totalorder %s19, 1
      %p79 = por %p77, %p78
      %p80 = scmp.ne.s32.totalorder %s71, %s72
      %p81 = scmp.eq.s32.totalorder %s19, 0
      %p82 = por %p80, %p81
      %p83 = scmp.ne.s32.totalorder %s71, %s72
      %p84 = scmp.eq.s32.totalorder %s20, 1
      %p85 = por %p83, %p84
      %p87 = scmp.ne.s32.totalorder %s72, %s86
      %p88 = scmp.eq.s32.totalorder %s20, 0
      %p89 = por %p87, %p88
      %s91 = sadd.s32 %s90, 1
      %p94 = scmp.eq.s32.totalorder %s14, 1
      %p95 = scmp.ne.s32.totalorder %s90, %s92
      %p96 = scmp.eq.s32.totalorder %s14, 0
      %p97 = por %p95, %p96
      %p98 = scmp.ne.s32.totalorder %s90, %s92
      %p99 = scmp.eq.s32.totalorder %s19, 1
      %p100 = por %p98, %p99
      %p101 = scmp.ne.s32.totalorder %s92, %s93
      %p102 = scmp.eq.s32.totalorder %s19, 0
      %p103 = por %p101, %p102
      %p104 = scmp.ne.s32.totalorder %s92, %s93
      %p105 = scmp.eq.s32.totalorder %s20, 1
      %p106 = por %p104, %p105
      %p108 = scmp.ne.s32.totalorder %s93, %s107
      %p109 = scmp.eq.s32.totalorder %s20, 0
      %p110 = por %p108, %p109
      %s111 = ssub.s32 %s14, %s21
      %p112 = scmp.eq.s32.totalorder %s111, 0
      %s114 = sadd.s32 %s113, 1
      %s115 = scalar_select %p112, %s113, %s114
      %p118 = pneg %p112
      %p119 = scmp.eq.s32.totalorder %s14, 1
      %p120 = por %p118, %p119
      %p121 = scmp.ne.s32.totalorder %s113, %s116
      %p122 = scmp.eq.s32.totalorder %s14, 0
      %p123 = por %p121, %p122
      %p124 = scmp.ne.s32.totalorder %s113, %s116
      %p125 = scmp.eq.s32.totalorder %s19, 1
      %p126 = por %p124, %p125
      %p127 = scmp.ne.s32.totalorder %s116, %s117
      %p128 = scmp.eq.s32.totalorder %s19, 0
      %p129 = por %p127, %p128
      %p130 = scmp.ne.s32.totalorder %s116, %s117
      %p131 = scmp.eq.s32.totalorder %s20, 1
      %p132 = por %p130, %p131
      %p134 = scmp.ne.s32.totalorder %s117, %s133
      %p135 = scmp.eq.s32.totalorder %s20, 0
      %p136 = por %p134, %p135
      %p137 = scmp.le.s32.totalorder 1, %s14
      %p138 = scmp.lt.s32.totalorder %s14, 3
      %p139 = pnand %p137, %p138
      %p140 = pneg %p139
      // Predicated region
      $region9: #{tpu_custom_call.1} parent=5 // pred_check
        _
      $region10: #{tpu_custom_call.1} parent=5 // pred_check_branch
        %142 = sbr.rel (%p139) target = $region12
      $region11: #{tpu_custom_call.1} parent=5 // pred_region
        %s143 = ssub.s32 %s14, 1
        // Predicated region
        $region13: #{tpu_custom_call.1} parent=11 // pred_check
          %p144 = pneg %p61
        $region14: #{tpu_custom_call.1} parent=11 // pred_check_branch
          %146 = sbr.rel (%p144) target = $region16
        $region15: #{tpu_custom_call.1} parent=11 // pred_region
          _
        $region16: #{tpu_custom_call.1} parent=11 // pred_fallthru
          _
        // Predicated region
        $region17: #{tpu_custom_call.1} parent=11 // pred_check
          %p147 = pneg %p82
        $region18: #{tpu_custom_call.1} parent=11 // pred_check_branch
          %149 = sbr.rel (%p147) target = $region20
        $region19: #{tpu_custom_call.1} parent=11 // pred_region
          %s151 = ssub.s32 256, 256
          %152 = vsyncadd [#allocation3], %s151
          %s153 = sshll.u32 [#allocation2], 4
          %s154 = int_to_ptr.vmem [resolvable:$true] %s153
          %159 = dma.hbm_to_vmem [thread:$0]  %s2, 256, %s154, [#allocation3], 128, 128, 8
        $region20: #{tpu_custom_call.1} parent=11 // pred_fallthru
          _
        // Predicated region
        $region21: #{tpu_custom_call.1} parent=11 // pred_check
          %p160 = pneg %p103
        $region22: #{tpu_custom_call.1} parent=11 // pred_check_branch
          %162 = sbr.rel (%p160) target = $region24
        $region23: #{tpu_custom_call.1} parent=11 // pred_region
          _
        $region24: #{tpu_custom_call.1} parent=11 // pred_fallthru
          _
      $region12: #{tpu_custom_call.1} parent=5 // pred_fallthru
        _
      %p163 = scmp.lt.s32.totalorder %s14, 2
      // Predicated region
      $region25: #{tpu_custom_call.1} parent=5 // pred_check
        %p164 = pneg %p163
      $region26: #{tpu_custom_call.1} parent=5 // pred_check_branch
        %166 = sbr.rel (%p164) target = $region28
      $region27: #{tpu_custom_call.1} parent=5 // pred_region
        // Predicated region
        $region29: #{tpu_custom_call.1} parent=27 // pred_check
          %p167 = pneg %p34
        $region30: #{tpu_custom_call.1} parent=27 // pred_check_branch
          %169 = sbr.rel (%p167) target = $region32
        $region31: #{tpu_custom_call.1} parent=27 // pred_region
          %s170 = smul.u32 9, %s14
          %s171 = ssub.s32 17, %s170
          %p172 = scmp.lt.s32.totalorder %s171, 9
          %s173 = scalar_select %p172, %s171, 9
          %s174 = smul.u32 128, %s173
          %p175 = scmp.lt.s32.totalorder %s170, 16
          %s176 = scalar_select %p175, %s170, 16
          %s177 = smul.addr %s176, 8
          %s178 = scalar_lea.vmem %s0, %s177
          %s179 = smul.u32 9, %s14
          %s180 = ssub.s32 17, %s179
          %p181 = scmp.lt.s32.totalorder %s180, 9
          %s182 = scalar_select %p181, %s180, 9
          %s183 = smul.u32 128, %s182
        $region32: #{tpu_custom_call.1} parent=27 // pred_fallthru
          _
      $region28: #{tpu_custom_call.1} parent=5 // pred_fallthru
        _
      %p184 = scmp.le.s32.totalorder 1, %s14
      %p185 = scmp.lt.s32.totalorder %s14, 3
      %p186 = pnand %p184, %p185
      %p187 = pneg %p186
      // Predicated region
      $region33: #{tpu_custom_call.1} parent=5 // pred_check
        _
      $region34: #{tpu_custom_call.1} parent=5 // pred_check_branch
        %189 = sbr.rel (%p186) target = $region36
      $region35: #{tpu_custom_call.1} parent=5 // pred_region
        %s190 = ssub.s32 %s14, 1
        // Predicated region
        $region37: #{tpu_custom_call.1} parent=35 // pred_check
          %p191 = pneg %p82
        $region38: #{tpu_custom_call.1} parent=35 // pred_check_branch
          %193 = sbr.rel (%p191) target = $region40
        $region39: #{tpu_custom_call.1} parent=35 // pred_region
          %194 = dma.done [#allocation3], 256
        $region40: #{tpu_custom_call.1} parent=35 // pred_fallthru
          _
        %s195 = smul.u32 9, %s19
        %s196 = ssub.s32 17, %s195
        %p197 = scmp.lt.s32.totalorder %s196, 9
        %s198 = scalar_select %p197, %s196, 9
        %s199 = smul.u32 128, %s198
        %p200 = scmp.lt.s32.totalorder %s195, 16
        %s201 = scalar_select %p200, %s195, 16
        %s202 = smul.addr %s201, 8
        %s203 = scalar_lea.vmem %s0, %s202
        %p204 = pneg %p40
        %p205 = pneg %p37
        %p206 = pneg %p61
        %p207 = pneg %p58
        %p208 = pneg %p82
        %p209 = pneg %p79
        %p210 = pneg %p103
        %p211 = pneg %p100
        %p212 = pneg %p129
        %p213 = pneg %p126
        %s214 = sand.u32 %s116, 1
        %s215 = scalar_lea.sflag [#allocation4], %s214
        %s216 = sand.u32 %s116, 1
        %s217 = smul.addr %s216, 72
        %s218 = scalar_lea.vmem [#allocation5], %s217
        %s219 = smul.u32 9, %s19
        %s220 = ssub.s32 17, %s219
        %p221 = scmp.lt.s32.totalorder %s220, 9
        %s222 = scalar_select %p221, %s220, 9
        %s223 = smul.u32 128, %s222
        %p224 = scmp.lt.s32.totalorder %s219, 16
        %s225 = scalar_select %p224, %s219, 16
        %s226 = smul.addr %s225, 8
        %s227 = scalar_lea.vmem %s0, %s226
        %s228 = smul.u32 9, %s19
        %s229 = ssub.s32 17, %s228
        %p230 = scmp.lt.s32.totalorder %s229, 9
        %s231 = scalar_select %p230, %s229, 9
        %s232 = smul.u32 128, %s231
        %s233 = smul.u32 9, %s19
        %s234 = ssub.s32 17, %s233
        %p235 = scmp.lt.s32.totalorder %s234, 9
        %s236 = scalar_select %p235, %s234, 9
        %s237 = smul.u32 128, %s236
        %v238 = vld [vmem:[%s227] sm:$0xff]
        %v239 = vld [vmem:[%s227 + $0x8] sm:$0xff]
        %v240 = vld [vmem:[%s227 + $0x10] sm:$0xff]
        %v241 = vld [vmem:[%s227 + $0x18] sm:$0xff]
        %v242 = vld [vmem:[%s227 + $0x20] sm:$0xff]
        %v243 = vld [vmem:[%s227 + $0x28] sm:$0xff]
        %v244 = vld [vmem:[%s227 + $0x30] sm:$0xff]
        %v245 = vld [vmem:[%s227 + $0x38] sm:$0xff]
        %v246 = vld [vmem:[%s227 + $0x40] sm:$0xff]
        %v247 = vld [vmem:[%s1] sm:$0xff]
        %v248 = vld [vmem:[%s1 + $0x8] sm:$0xff]
        %v249 = vld [vmem:[%s1 + $0x10] sm:$0xff]
        %v250 = vld [vmem:[%s1 + $0x18] sm:$0xff]
        %v251 = vld [vmem:[%s1 + $0x20] sm:$0xff]
        %v252 = vld [vmem:[%s1 + $0x28] sm:$0xff]
        %v253 = vld [vmem:[%s1 + $0x30] sm:$0xff]
        %v254 = vld [vmem:[%s1 + $0x38] sm:$0xff]
        %v255 = vld [vmem:[%s1 + $0x40] sm:$0xff]
        %v256 = vld [vmem:[%s1 + $0x48] sm:$0xff]
        %v257 = vld [vmem:[%s1 + $0x50] sm:$0xff]
        %v258 = vld [vmem:[%s1 + $0x58] sm:$0xff]
        %v259 = vld [vmem:[%s1 + $0x60] sm:$0xff]
        %v260 = vld [vmem:[%s1 + $0x68] sm:$0xff]
        %v261 = vld [vmem:[%s1 + $0x70] sm:$0xff]
        %v262 = vld [vmem:[%s1 + $0x78] sm:$0xff]
        %263 = vmatprep.subr.mxu0 0.0
        %264 = vmatpush1.msra.mxu0 %v247
        %265 = vmatprep.subr.mxu0 0.0
        %266 = vmatpush1.msra.mxu0 %v248
        %267 = vmatprep.subr.mxu0 0.0
        %268 = vmatpush1.msra.mxu0 %v249
        %269 = vmatprep.subr.mxu0 0.0
        %270 = vmatpush1.msra.mxu0 %v250
        %271 = vmatprep.subr.mxu0 0.0
        %272 = vmatpush1.msra.mxu0 %v251
        %273 = vmatprep.subr.mxu0 0.0
        %274 = vmatpush1.msra.mxu0 %v252
        %275 = vmatprep.subr.mxu0 0.0
        %276 = vmatpush1.msra.mxu0 %v253
        %277 = vmatprep.subr.mxu0 0.0
        %278 = vmatpush1.msra.mxu0 %v254
        %279 = vmatprep.subr.mxu0 0.0
        %280 = vmatpush1.msra.mxu0 %v255
        %281 = vmatprep.subr.mxu0 0.0
        %282 = vmatpush1.msra.mxu0 %v256
        %283 = vmatprep.subr.mxu0 0.0
        %284 = vmatpush1.msra.mxu0 %v257
        %285 = vmatprep.subr.mxu0 0.0
        %286 = vmatpush1.msra.mxu0 %v258
        %287 = vmatprep.subr.mxu0 0.0
        %288 = vmatpush1.msra.mxu0 %v259
        %289 = vmatprep.subr.mxu0 0.0
        %290 = vmatpush1.msra.mxu0 %v260
        %291 = vmatprep.subr.mxu0 0.0
        %292 = vmatpush1.msra.mxu0 %v261
        %293 = vmatprep.subr.mxu0 0.0
        %294 = vmatpush1.msra.mxu0 %v262
        %295 = vmatprep.subr.mxu0 0.0
        %296 = vmatpush1.msra.mxu0 0.0
        %297 = vmatprep.subr.mxu0 0.0
        %298 = vmatpush1.msra.mxu0 0.0
        %299 = vmatprep.subr.mxu0 0.0
        %300 = vmatpush1.msra.mxu0 0.0
        %301 = vmatprep.subr.mxu0 0.0
        %302 = vmatpush1.msra.mxu0 0.0
        %303 = vmatprep.subr.mxu0 0.0
        %304 = vmatpush1.msra.mxu0 0.0
        %305 = vmatprep.subr.mxu0 0.0
        %306 = vmatpush1.msra.mxu0 0.0
        %307 = vmatprep.subr.mxu0 0.0
        %308 = vmatpush1.msra.mxu0 0.0
        %309 = vmatprep.subr.mxu0 0.0
        %310 = vmatpush1.msra.mxu0 0.0
        %311 = vmatprep.subr.mxu0 0.0
        %312 = vmatpush1.msra.mxu0 0.0
        %313 = vmatprep.subr.mxu0 0.0
        %314 = vmatpush1.msra.mxu0 0.0
        %315 = vmatprep.subr.mxu0 0.0
        %316 = vmatpush1.msra.mxu0 0.0
        %317 = vmatprep.subr.mxu0 0.0
        %318 = vmatpush1.msra.mxu0 0.0
        %319 = vmatprep.subr.mxu0 0.0
        %320 = vmatpush1.msra.mxu0 0.0
        %321 = vmatprep.subr.mxu0 0.0
        %322 = vmatpush1.msra.mxu0 0.0
        %323 = vmatprep.subr.mxu0 0.0
        %324 = vmatpush1.msra.mxu0 0.0
        %325 = vmatprep.subr.mxu0 0.0
        %326 = vmatpush1.msra.mxu0 0.0
        %327 = vmatprep.mubr.f32.mxu0 0.0
        %328 = vmatmul.mubr.f32.gmra.mrb[0].mxu0 %v238
        %v329 = vpop.f32.mrb[0].mxu0
        %v330 = vadd.f32 0.0, %v329
        %v331 = vpop.f32.mrb[0].mxu0
        %332 = vmatprep.mubr.f32.mxu0 0.0
        %333 = vmatmul.mubr.f32.gmra.mrb[0].mxu0 %v239
        %v334 = vpop.f32.mrb[0].mxu0
        %v335 = vadd.f32 0.0, %v334
        %v336 = vpop.f32.mrb[0].mxu0
        %337 = vmatprep.mubr.f32.mxu0 0.0
        %338 = vmatmul.mubr.f32.gmra.mrb[0].mxu0 %v240
        %v339 = vpop.f32.mrb[0].mxu0
        %v340 = vadd.f32 0.0, %v339
        %v341 = vpop.f32.mrb[0].mxu0
        %342 = vmatprep.mubr.f32.mxu0 0.0
        %343 = vmatmul.mubr.f32.gmra.mrb[0].mxu0 %v241
        %v344 = vpop.f32.mrb[0].mxu0
        %v345 = vadd.f32 0.0, %v344
        %v346 = vpop.f32.mrb[0].mxu0
        %347 = vmatprep.mubr.f32.mxu0 0.0
        %348 = vmatmul.mubr.f32.gmra.mrb[0].mxu0 %v242
        %v349 = vpop.f32.mrb[0].mxu0
        %v350 = vadd.f32 0.0, %v349
        %v351 = vpop.f32.mrb[0].mxu0
        %352 = vmatprep.mubr.f32.mxu0 0.0
        %353 = vmatmul.mubr.f32.gmra.mrb[0].mxu0 %v243
        %v354 = vpop.f32.mrb[0].mxu0
        %v355 = vadd.f32 0.0, %v354
        %v356 = vpop.f32.mrb[0].mxu0
        %357 = vmatprep.mubr.f32.mxu0 0.0
        %358 = vmatmul.mubr.f32.gmra.mrb[0].mxu0 %v244
        %v359 = vpop.f32.mrb[0].mxu0
        %v360 = vadd.f32 0.0, %v359
        %v361 = vpop.f32.mrb[0].mxu0
        %362 = vmatprep.mubr.f32.mxu0 0.0
        %363 = vmatmul.mubr.f32.gmra.mrb[0].mxu0 %v245
        %v364 = vpop.f32.mrb[0].mxu0
        %v365 = vadd.f32 0.0, %v364
        %v366 = vpop.f32.mrb[0].mxu0
        %367 = vmatprep.mubr.f32.mxu0 0.0
        %368 = vmatmul.mubr.f32.gmra.mrb[0].mxu0 %v246
        %v369 = vpop.f32.mrb[0].mxu0
        %v370 = vadd.f32 0.0, %v369
        %v371 = vpop.f32.mrb[0].mxu0
        %372 = vdwg.mxu0
        %v373 = vmul.f32 %v238, %v238
        %v374 = vmul.f32 %v239, %v239
        %v375 = vmul.f32 %v240, %v240
        %v376 = vmul.f32 %v241, %v241
        %v377 = vmul.f32 %v242, %v242
        %v378 = vmul.f32 %v243, %v243
        %v379 = vmul.f32 %v244, %v244
        %v380 = vmul.f32 %v245, %v245
        %v381 = vmul.f32 %v246, %v246
        %382 = vmatprep.subr.mxu0 0.0
        %383 = vmatpush1.msra.mxu0 %v247
        %384 = vmatprep.subr.mxu0 0.0
        %385 = vmatpush1.msra.mxu0 %v248
        %386 = vmatprep.subr.mxu0 0.0
        %387 = vmatpush1.msra.mxu0 %v249
        %388 = vmatprep.subr.mxu0 0.0
        %389 = vmatpush1.msra.mxu0 %v250
        %390 = vmatprep.subr.mxu0 0.0
        %391 = vmatpush1.msra.mxu0 %v251
        %392 = vmatprep.subr.mxu0 0.0
        %393 = vmatpush1.msra.mxu0 %v252
        %394 = vmatprep.subr.mxu0 0.0
        %395 = vmatpush1.msra.mxu0 %v253
        %396 = vmatprep.subr.mxu0 0.0
        %397 = vmatpush1.msra.mxu0 %v254
        %398 = vmatprep.subr.mxu0 0.0
        %399 = vmatpush1.msra.mxu0 %v255
        %400 = vmatprep.subr.mxu0 0.0
        %401 = vmatpush1.msra.mxu0 %v256
        %402 = vmatprep.subr.mxu0 0.0
        %403 = vmatpush1.msra.mxu0 %v257
        %404 = vmatprep.subr.mxu0 0.0
        %405 = vmatpush1.msra.mxu0 %v258
        %406 = vmatprep.subr.mxu0 0.0
        %407 = vmatpush1.msra.mxu0 %v259
        %408 = vmatprep.subr.mxu0 0.0
        %409 = vmatpush1.msra.mxu0 %v260
        %410 = vmatprep.subr.mxu0 0.0
        %411 = vmatpush1.msra.mxu0 %v261
        %412 = vmatprep.subr.mxu0 0.0
        %413 = vmatpush1.msra.mxu0 %v262
        %414 = vmatprep.subr.mxu0 0.0
        %415 = vmatpush1.msra.mxu0 0.0
        %416 = vmatprep.subr.mxu0 0.0
        %417 = vmatpush1.msra.mxu0 0.0
        %418 = vmatprep.subr.mxu0 0.0
        %419 = vmatpush1.msra.mxu0 0.0
        %420 = vmatprep.subr.mxu0 0.0
        %421 = vmatpush1.msra.mxu0 0.0
        %422 = vmatprep.subr.mxu0 0.0
        %423 = vmatpush1.msra.mxu0 0.0
        %424 = vmatprep.subr.mxu0 0.0
        %425 = vmatpush1.msra.mxu0 0.0
        %426 = vmatprep.subr.mxu0 0.0
        %427 = vmatpush1.msra.mxu0 0.0
        %428 = vmatprep.subr.mxu0 0.0
        %429 = vmatpush1.msra.mxu0 0.0
        %430 = vmatprep.subr.mxu0 0.0
        %431 = vmatpush1.msra.mxu0 0.0
        %432 = vmatprep.subr.mxu0 0.0
        %433 = vmatpush1.msra.mxu0 0.0
        %434 = vmatprep.subr.mxu0 0.0
        %435 = vmatpush1.msra.mxu0 0.0
        %436 = vmatprep.subr.mxu0 0.0
        %437 = vmatpush1.msra.mxu0 0.0
        %438 = vmatprep.subr.mxu0 0.0
        %439 = vmatpush1.msra.mxu0 0.0
        %440 = vmatprep.subr.mxu0 0.0
        %441 = vmatpush1.msra.mxu0 0.0
        %442 = vmatprep.subr.mxu0 0.0
        %443 = vmatpush1.msra.mxu0 0.0
        %444 = vmatprep.subr.mxu0 0.0
        %445 = vmatpush1.msra.mxu0 0.0
        %446 = vmatprep.mubr.f32.mxu0 0.0
        %447 = vmatmul.mubr.f32.gmra.mrb[0].mxu0 %v373
        %v448 = vpop.f32.mrb[0].mxu0
        %v449 = vadd.f32 0.0, %v448
        %v450 = vpop.f32.mrb[0].mxu0
        %451 = vmatprep.mubr.f32.mxu0 0.0
        %452 = vmatmul.mubr.f32.gmra.mrb[0].mxu0 %v374
        %v453 = vpop.f32.mrb[0].mxu0
        %v454 = vadd.f32 0.0, %v453
        %v455 = vpop.f32.mrb[0].mxu0
        %456 = vmatprep.mubr.f32.mxu0 0.0
        %457 = vmatmul.mubr.f32.gmra.mrb[0].mxu0 %v375
        %v458 = vpop.f32.mrb[0].mxu0
        %v459 = vadd.f32 0.0, %v458
        %v460 = vpop.f32.mrb[0].mxu0
        %461 = vmatprep.mubr.f32.mxu0 0.0
        %462 = vmatmul.mubr.f32.gmra.mrb[0].mxu0 %v376
        %v463 = vpop.f32.mrb[0].mxu0
        %v464 = vadd.f32 0.0, %v463
        %v465 = vpop.f32.mrb[0].mxu0
        %466 = vmatprep.mubr.f32.mxu0 0.0
        %467 = vmatmul.mubr.f32.gmra.mrb[0].mxu0 %v377
        %v468 = vpop.f32.mrb[0].mxu0
        %v469 = vadd.f32 0.0, %v468
        %v470 = vpop.f32.mrb[0].mxu0
        %471 = vmatprep.mubr.f32.mxu0 0.0
        %472 = vmatmul.mubr.f32.gmra.mrb[0].mxu0 %v378
        %v473 = vpop.f32.mrb[0].mxu0
        %v474 = vadd.f32 0.0, %v473
        %v475 = vpop.f32.mrb[0].mxu0
        %476 = vmatprep.mubr.f32.mxu0 0.0
        %477 = vmatmul.mubr.f32.gmra.mrb[0].mxu0 %v379
        %v478 = vpop.f32.mrb[0].mxu0
        %v479 = vadd.f32 0.0, %v478
        %v480 = vpop.f32.mrb[0].mxu0
        %481 = vmatprep.mubr.f32.mxu0 0.0
        %482 = vmatmul.mubr.f32.gmra.mrb[0].mxu0 %v380
        %v483 = vpop.f32.mrb[0].mxu0
        %v484 = vadd.f32 0.0, %v483
        %v485 = vpop.f32.mrb[0].mxu0
        %486 = vmatprep.mubr.f32.mxu0 0.0
        %487 = vmatmul.mubr.f32.gmra.mrb[0].mxu0 %v381
        %v488 = vpop.f32.mrb[0].mxu0
        %v489 = vadd.f32 0.0, %v488
        %v490 = vpop.f32.mrb[0].mxu0
        %491 = vdwg.mxu0
        %v492 = vmul.f32 %v330, 0.125
        %v493 = vmul.f32 %v335, 0.125
        %v494 = vmul.f32 %v340, 0.125
        %v495 = vmul.f32 %v345, 0.125
        %v496 = vmul.f32 %v350, 0.125
        %v497 = vmul.f32 %v355, 0.125
        %v498 = vmul.f32 %v360, 0.125
        %v499 = vmul.f32 %v365, 0.125
        %v500 = vmul.f32 %v370, 0.125
        %v501 = vmul.f32 %v330, %v492
        %v502 = vmul.f32 %v335, %v493
        %v503 = vmul.f32 %v340, %v494
        %v504 = vmul.f32 %v345, %v495
        %v505 = vmul.f32 %v350, %v496
        %v506 = vmul.f32 %v355, %v497
        %v507 = vmul.f32 %v360, %v498
        %v508 = vmul.f32 %v365, %v499
        %v509 = vmul.f32 %v370, %v500
        %v510 = vsub.f32 %v449, %v501
        %v511 = vsub.f32 %v454, %v502
        %v512 = vsub.f32 %v459, %v503
        %v513 = vsub.f32 %v464, %v504
        %v514 = vsub.f32 %v469, %v505
        %v515 = vsub.f32 %v474, %v506
        %v516 = vsub.f32 %v479, %v507
        %v517 = vsub.f32 %v484, %v508
        %v518 = vsub.f32 %v489, %v509
        %v519 = vmul.f32 %v510, 0.14285715
        %v520 = vmul.f32 %v511, 0.14285715
        %v521 = vmul.f32 %v512, 0.14285715
        %v522 = vmul.f32 %v513, 0.14285715
        %v523 = vmul.f32 %v514, 0.14285715
        %v524 = vmul.f32 %v515, 0.14285715
        %v525 = vmul.f32 %v516, 0.14285715
        %v526 = vmul.f32 %v517, 0.14285715
        %v527 = vmul.f32 %v518, 0.14285715
        %v528 = vmax.f32 %v519, 0.0
        %v529 = vmax.f32 %v520, 0.0
        %v530 = vmax.f32 %v521, 0.0
        %v531 = vmax.f32 %v522, 0.0
        %v532 = vmax.f32 %v523, 0.0
        %v533 = vmax.f32 %v524, 0.0
        %v534 = vmax.f32 %v525, 0.0
        %v535 = vmax.f32 %v526, 0.0
        %v536 = vmax.f32 %v527, 0.0
        %v537 = vadd.f32 %v528, 1e-08
        %v538 = vadd.f32 %v529, 1e-08
        %v539 = vadd.f32 %v530, 1e-08
        %v540 = vadd.f32 %v531, 1e-08
        %v541 = vadd.f32 %v532, 1e-08
        %v542 = vadd.f32 %v533, 1e-08
        %v543 = vadd.f32 %v534, 1e-08
        %v544 = vadd.f32 %v535, 1e-08
        %v545 = vadd.f32 %v536, 1e-08
        %v546 = vrsqrt.pop %v537
        %v547 = vrsqrt.pop %v538
        %v548 = vrsqrt.pop %v539
        %v549 = vrsqrt.pop %v540
        %v550 = vrsqrt.pop %v541
        %v551 = vrsqrt.pop %v542
        %v552 = vrsqrt.pop %v543
        %v553 = vrsqrt.pop %v544
        %v554 = vrsqrt.pop %v545
        %v555 = vld [vmem:[#allocation2] sm:$0xff]
        %v556 = vld [vmem:[#allocation2 + $0x8] sm:$0xff]
        %vm557 = vcmask 130048
        %v559 = vsel %vm557, %v546, 0
        %v562 = vsel %vm557, %v547, 0
        %v565 = vsel %vm557, %v548, 0
        %v568 = vsel %vm557, %v549, 0
        %v571 = vsel %vm557, %v550, 0
        %v574 = vsel %vm557, %v551, 0
        %v577 = vsel %vm557, %v552, 0
        %v580 = vsel %vm557, %v553, 0
        %v583 = vsel %vm557, %v554, 0
        %585 = vmatprep.subr.mxu0 0.0
        %586 = vmatpush1.msra.mxu0 %v555
        %587 = vmatprep.subr.mxu0 0.0
        %588 = vmatpush1.msra.mxu0 %v556
        %589 = vmatprep.subr.mxu0 0.0
        %590 = vmatpush1.msra.mxu0 0.0
        %591 = vmatprep.subr.mxu0 0.0
        %592 = vmatpush1.msra.mxu0 0.0
        %593 = vmatprep.subr.mxu0 0.0
        %594 = vmatpush1.msra.mxu0 0.0
        %595 = vmatprep.subr.mxu0 0.0
        %596 = vmatpush1.msra.mxu0 0.0
        %597 = vmatprep.subr.mxu0 0.0
        %598 = vmatpush1.msra.mxu0 0.0
        %599 = vmatprep.subr.mxu0 0.0
        %600 = vmatpush1.msra.mxu0 0.0
        %601 = vmatprep.subr.mxu0 0.0
        %602 = vmatpush1.msra.mxu0 0.0
        %603 = vmatprep.subr.mxu0 0.0
        %604 = vmatpush1.msra.mxu0 0.0
        %605 = vmatprep.subr.mxu0 0.0
        %606 = vmatpush1.msra.mxu0 0.0
        %607 = vmatprep.subr.mxu0 0.0
        %608 = vmatpush1.msra.mxu0 0.0
        %609 = vmatprep.subr.mxu0 0.0
        %610 = vmatpush1.msra.mxu0 0.0
        %611 = vmatprep.subr.mxu0 0.0
        %612 = vmatpush1.msra.mxu0 0.0
        %613 = vmatprep.subr.mxu0 0.0
        %614 = vmatpush1.msra.mxu0 0.0
        %615 = vmatprep.subr.mxu0 0.0
        %616 = vmatpush1.msra.mxu0 0.0
        %617 = vmatprep.subr.mxu0 0.0
        %618 = vmatpush1.msra.mxu0 0.0
        %619 = vmatprep.subr.mxu0 0.0
        %620 = vmatpush1.msra.mxu0 0.0
        %621 = vmatprep.subr.mxu0 0.0
        %622 = vmatpush1.msra.mxu0 0.0
        %623 = vmatprep.subr.mxu0 0.0
        %624 = vmatpush1.msra.mxu0 0.0
        %625 = vmatprep.subr.mxu0 0.0
        %626 = vmatpush1.msra.mxu0 0.0
        %627 = vmatprep.subr.mxu0 0.0
        %628 = vmatpush1.msra.mxu0 0.0
        %629 = vmatprep.subr.mxu0 0.0
        %630 = vmatpush1.msra.mxu0 0.0
        %631 = vmatprep.subr.mxu0 0.0
        %632 = vmatpush1.msra.mxu0 0.0
        %633 = vmatprep.subr.mxu0 0.0
        %634 = vmatpush1.msra.mxu0 0.0
        %635 = vmatprep.subr.mxu0 0.0
        %636 = vmatpush1.msra.mxu0 0.0
        %637 = vmatprep.subr.mxu0 0.0
        %638 = vmatpush1.msra.mxu0 0.0
        %639 = vmatprep.subr.mxu0 0.0
        %640 = vmatpush1.msra.mxu0 0.0
        %641 = vmatprep.subr.mxu0 0.0
        %642 = vmatpush1.msra.mxu0 0.0
        %643 = vmatprep.subr.mxu0 0.0
        %644 = vmatpush1.msra.mxu0 0.0
        %645 = vmatprep.subr.mxu0 0.0
        %646 = vmatpush1.msra.mxu0 0.0
        %647 = vmatprep.subr.mxu0 0.0
        %648 = vmatpush1.msra.mxu0 0.0
        %649 = vmatprep.mubr.f32.mxu0 0.0
        %650 = vmatmul.mubr.f32.gmra.mrb[0].mxu0 %v559
        %v651 = vpop.f32.mrb[0].mxu0
        %v652 = vadd.f32 0.0, %v651
        %v653 = vpop.f32.mrb[0].mxu0
        %654 = vmatprep.mubr.f32.mxu0 0.0
        %655 = vmatmul.mubr.f32.gmra.mrb[0].mxu0 %v562
        %v656 = vpop.f32.mrb[0].mxu0
        %v657 = vadd.f32 0.0, %v656
        %v658 = vpop.f32.mrb[0].mxu0
        %659 = vmatprep.mubr.f32.mxu0 0.0
        %660 = vmatmul.mubr.f32.gmra.mrb[0].mxu0 %v565
        %v661 = vpop.f32.mrb[0].mxu0
        %v662 = vadd.f32 0.0, %v661
        %v663 = vpop.f32.mrb[0].mxu0
        %664 = vmatprep.mubr.f32.mxu0 0.0
        %665 = vmatmul.mubr.f32.gmra.mrb[0].mxu0 %v568
        %v666 = vpop.f32.mrb[0].mxu0
        %v667 = vadd.f32 0.0, %v666
        %v668 = vpop.f32.mrb[0].mxu0
        %669 = vmatprep.mubr.f32.mxu0 0.0
        %670 = vmatmul.mubr.f32.gmra.mrb[0].mxu0 %v571
        %v671 = vpop.f32.mrb[0].mxu0
        %v672 = vadd.f32 0.0, %v671
        %v673 = vpop.f32.mrb[0].mxu0
        %674 = vmatprep.mubr.f32.mxu0 0.0
        %675 = vmatmul.mubr.f32.gmra.mrb[0].mxu0 %v574
        %v676 = vpop.f32.mrb[0].mxu0
        %v677 = vadd.f32 0.0, %v676
        %v678 = vpop.f32.mrb[0].mxu0
        %679 = vmatprep.mubr.f32.mxu0 0.0
        %680 = vmatmul.mubr.f32.gmra.mrb[0].mxu0 %v577
        %v681 = vpop.f32.mrb[0].mxu0
        %v682 = vadd.f32 0.0, %v681
        %v683 = vpop.f32.mrb[0].mxu0
        %684 = vmatprep.mubr.f32.mxu0 0.0
        %685 = vmatmul.mubr.f32.gmra.mrb[0].mxu0 %v580
        %v686 = vpop.f32.mrb[0].mxu0
        %v687 = vadd.f32 0.0, %v686
        %v688 = vpop.f32.mrb[0].mxu0
        %689 = vmatprep.mubr.f32.mxu0 0.0
        %690 = vmatmul.mubr.f32.gmra.mrb[0].mxu0 %v583
        %v691 = vpop.f32.mrb[0].mxu0
        %v692 = vadd.f32 0.0, %v691
        %v693 = vpop.f32.mrb[0].mxu0
        %694 = vdwg.mxu0
        %v695 = vld [vmem:[%s3] sm:$0x1]
        %v696 = vmul.f32 %v492, %v546
        %v697 = vmul.f32 %v493, %v547
        %v698 = vmul.f32 %v494, %v548
        %v699 = vmul.f32 %v495, %v549
        %v700 = vmul.f32 %v496, %v550
        %v701 = vmul.f32 %v497, %v551
        %v702 = vmul.f32 %v498, %v552
        %v703 = vmul.f32 %v499, %v553
        %v704 = vmul.f32 %v500, %v554
        %v706 = vsel %vm557, %v696, 0
        %v709 = vsel %vm557, %v697, 0
        %v712 = vsel %vm557, %v698, 0
        %v715 = vsel %vm557, %v699, 0
        %v718 = vsel %vm557, %v700, 0
        %v721 = vsel %vm557, %v701, 0
        %v724 = vsel %vm557, %v702, 0
        %v727 = vsel %vm557, %v703, 0
        %v730 = vsel %vm557, %v704, 0
        %732 = vmatprep.subr.mxu0 0.0
        %733 = vmatpush1.msra.mxu0 %v555
        %734 = vmatprep.subr.mxu0 0.0
        %735 = vmatpush1.msra.mxu0 %v556
        %736 = vmatprep.subr.mxu0 0.0
        %737 = vmatpush1.msra.mxu0 0.0
        %738 = vmatprep.subr.mxu0 0.0
        %739 = vmatpush1.msra.mxu0 0.0
        %740 = vmatprep.subr.mxu0 0.0
        %741 = vmatpush1.msra.mxu0 0.0
        %742 = vmatprep.subr.mxu0 0.0
        %743 = vmatpush1.msra.mxu0 0.0
        %744 = vmatprep.subr.mxu0 0.0
        %745 = vmatpush1.msra.mxu0 0.0
        %746 = vmatprep.subr.mxu0 0.0
        %747 = vmatpush1.msra.mxu0 0.0
        %748 = vmatprep.subr.mxu0 0.0
        %749 = vmatpush1.msra.mxu0 0.0
        %750 = vmatprep.subr.mxu0 0.0
        %751 = vmatpush1.msra.mxu0 0.0
        %752 = vmatprep.subr.mxu0 0.0
        %753 = vmatpush1.msra.mxu0 0.0
        %754 = vmatprep.subr.mxu0 0.0
        %755 = vmatpush1.msra.mxu0 0.0
        %756 = vmatprep.subr.mxu0 0.0
        %757 = vmatpush1.msra.mxu0 0.0
        %758 = vmatprep.subr.mxu0 0.0
        %759 = vmatpush1.msra.mxu0 0.0
        %760 = vmatprep.subr.mxu0 0.0
        %761 = vmatpush1.msra.mxu0 0.0
        %762 = vmatprep.subr.mxu0 0.0
        %763 = vmatpush1.msra.mxu0 0.0
        %764 = vmatprep.subr.mxu0 0.0
        %765 = vmatpush1.msra.mxu0 0.0
        %766 = vmatprep.subr.mxu0 0.0
        %767 = vmatpush1.msra.mxu0 0.0
        %768 = vmatprep.subr.mxu0 0.0
        %769 = vmatpush1.msra.mxu0 0.0
        %770 = vmatprep.subr.mxu0 0.0
        %771 = vmatpush1.msra.mxu0 0.0
        %772 = vmatprep.subr.mxu0 0.0
        %773 = vmatpush1.msra.mxu0 0.0
        %774 = vmatprep.subr.mxu0 0.0
        %775 = vmatpush1.msra.mxu0 0.0
        %776 = vmatprep.subr.mxu0 0.0
        %777 = vmatpush1.msra.mxu0 0.0
        %778 = vmatprep.subr.mxu0 0.0
        %779 = vmatpush1.msra.mxu0 0.0
        %780 = vmatprep.subr.mxu0 0.0
        %781 = vmatpush1.msra.mxu0 0.0
        %782 = vmatprep.subr.mxu0 0.0
        %783 = vmatpush1.msra.mxu0 0.0
        %784 = vmatprep.subr.mxu0 0.0
        %785 = vmatpush1.msra.mxu0 0.0
        %786 = vmatprep.subr.mxu0 0.0
        %787 = vmatpush1.msra.mxu0 0.0
        %788 = vmatprep.subr.mxu0 0.0
        %789 = vmatpush1.msra.mxu0 0.0
        %790 = vmatprep.subr.mxu0 0.0
        %791 = vmatpush1.msra.mxu0 0.0
        %792 = vmatprep.subr.mxu0 0.0
        %793 = vmatpush1.msra.mxu0 0.0
        %794 = vmatprep.subr.mxu0 0.0
        %795 = vmatpush1.msra.mxu0 0.0
        %796 = vmatprep.mubr.f32.mxu0 0.0
        %797 = vmatmul.mubr.f32.gmra.mrb[0].mxu0 %v706
        %v798 = vpop.f32.mrb[0].mxu0
        %v799 = vadd.f32 0.0, %v798
        %v800 = vpop.f32.mrb[0].mxu0
        %801 = vmatprep.mubr.f32.mxu0 0.0
        %802 = vmatmul.mubr.f32.gmra.mrb[0].mxu0 %v709
        %v803 = vpop.f32.mrb[0].mxu0
        %v804 = vadd.f32 0.0, %v803
        %v805 = vpop.f32.mrb[0].mxu0
        %806 = vmatprep.mubr.f32.mxu0 0.0
        %807 = vmatmul.mubr.f32.gmra.mrb[0].mxu0 %v712
        %v808 = vpop.f32.mrb[0].mxu0
        %v809 = vadd.f32 0.0, %v808
        %v810 = vpop.f32.mrb[0].mxu0
        %811 = vmatprep.mubr.f32.mxu0 0.0
        %812 = vmatmul.mubr.f32.gmra.mrb[0].mxu0 %v715
        %v813 = vpop.f32.mrb[0].mxu0
        %v814 = vadd.f32 0.0, %v813
        %v815 = vpop.f32.mrb[0].mxu0
        %816 = vmatprep.mubr.f32.mxu0 0.0
        %817 = vmatmul.mubr.f32.gmra.mrb[0].mxu0 %v718
        %v818 = vpop.f32.mrb[0].mxu0
        %v819 = vadd.f32 0.0, %v818
        %v820 = vpop.f32.mrb[0].mxu0
        %821 = vmatprep.mubr.f32.mxu0 0.0
        %822 = vmatmul.mubr.f32.gmra.mrb[0].mxu0 %v721
        %v823 = vpop.f32.mrb[0].mxu0
        %v824 = vadd.f32 0.0, %v823
        %v825 = vpop.f32.mrb[0].mxu0
        %826 = vmatprep.mubr.f32.mxu0 0.0
        %827 = vmatmul.mubr.f32.gmra.mrb[0].mxu0 %v724
        %v828 = vpop.f32.mrb[0].mxu0
        %v829 = vadd.f32 0.0, %v828
        %v830 = vpop.f32.mrb[0].mxu0
        %831 = vmatprep.mubr.f32.mxu0 0.0
        %832 = vmatmul.mubr.f32.gmra.mrb[0].mxu0 %v727
        %v833 = vpop.f32.mrb[0].mxu0
        %v834 = vadd.f32 0.0, %v833
        %v835 = vpop.f32.mrb[0].mxu0
        %836 = vmatprep.mubr.f32.mxu0 0.0
        %837 = vmatmul.mubr.f32.gmra.mrb[0].mxu0 %v730
        %v838 = vpop.f32.mrb[0].mxu0
        %v839 = vadd.f32 0.0, %v838
        %v840 = vpop.f32.mrb[0].mxu0
        %841 = vdwg.mxu0
        %v843 = vlaneseq
        %v844 = vshrl.u32 %v843, 7
        %v845 = vsub.s32 0, %v844
        %v846 = vrot.slane %v695, %v845
        %v848 = vsub.f32 %v846, %v799
        %v849 = vsub.f32 %v846, %v804
        %v850 = vsub.f32 %v846, %v809
        %v851 = vsub.f32 %v846, %v814
        %v852 = vsub.f32 %v846, %v819
        %v853 = vsub.f32 %v846, %v824
        %v854 = vsub.f32 %v846, %v829
        %v855 = vsub.f32 %v846, %v834
        %v856 = vsub.f32 %v846, %v839
        %v857 = vmul.f32 %v238, %v652
        %v858 = vmul.f32 %v239, %v657
        %v859 = vmul.f32 %v240, %v662
        %v860 = vmul.f32 %v241, %v667
        %v861 = vmul.f32 %v242, %v672
        %v862 = vmul.f32 %v243, %v677
        %v863 = vmul.f32 %v244, %v682
        %v864 = vmul.f32 %v245, %v687
        %v865 = vmul.f32 %v246, %v692
        %v866 = vadd.f32 %v857, %v848
        %v867 = vadd.f32 %v858, %v849
        %v868 = vadd.f32 %v859, %v850
        %v869 = vadd.f32 %v860, %v851
        %v870 = vadd.f32 %v861, %v852
        %v871 = vadd.f32 %v862, %v853
        %v872 = vadd.f32 %v863, %v854
        %v873 = vadd.f32 %v864, %v855
        %v874 = vadd.f32 %v865, %v856
        %875 = vst [vmem:[%s218] sm:$0xff] %v866
        %876 = vst [vmem:[%s218 + $0x8] sm:$0xff] %v867
        %877 = vst [vmem:[%s218 + $0x10] sm:$0xff] %v868
        %878 = vst [vmem:[%s218 + $0x18] sm:$0xff] %v869
        %879 = vst [vmem:[%s218 + $0x20] sm:$0xff] %v870
        %880 = vst [vmem:[%s218 + $0x28] sm:$0xff] %v871
        %881 = vst [vmem:[%s218 + $0x30] sm:$0xff] %v872
        %882 = vst [vmem:[%s218 + $0x38] sm:$0xff] %v873
        %883 = vst [vmem:[%s218 + $0x40] sm:$0xff] %v874
        %s884 = sand.u32 %s116, 1
        %s885 = scalar_lea.sflag [#allocation4], %s884
        %s886 = sand.u32 %s116, 1
        %s887 = smul.addr %s886, 72
        %s888 = scalar_lea.vmem [#allocation5], %s887
        // Predicated region
        $region41: #{tpu_custom_call.1} parent=35 // pred_check
          %p889 = pneg %p126
        $region42: #{tpu_custom_call.1} parent=35 // pred_check_branch
          %891 = sbr.rel (%p889) target = $region44
        $region43: #{tpu_custom_call.1} parent=35 // pred_region
          %s892 = smul.u32 9, %s19
          %s893 = ssub.s32 17, %s892
          %p894 = scmp.lt.s32.totalorder %s893, 9
          %s895 = scalar_select %p894, %s893, 9
          %s896 = smul.u32 128, %s895
          %s898 = ssub.s32 1152, %s896
          %899 = vsyncadd %s885, %s898
          %p900 = scmp.ne.s32.totalorder 0, %s896
          %s901 = smul.addr %s892, 128
          %s902 = scalar_lea.hbm %s4, %s901
          %s903 = smul.u32 8, %s895
          %s904 = sshll.u32 %s888, 4
          %s905 = int_to_ptr.vmem [resolvable:$true] %s904
          %s906 = sshll.u32 %s903, 4
          %910 = dma.vmem_to_hbm [thread:$0]  (%p900), %s905, %s906, %s902, %s885, 128, 128, 8
        $region44: #{tpu_custom_call.1} parent=35 // pred_fallthru
          _
      $region36: #{tpu_custom_call.1} parent=5 // pred_fallthru
        _
      %p911 = scmp.le.s32.totalorder 2, %s14
      // Predicated region
      $region45: #{tpu_custom_call.1} parent=5 // pred_check
        %p912 = pneg %p911
      $region46: #{tpu_custom_call.1} parent=5 // pred_check_branch
        %914 = sbr.rel (%p912) target = $region48
      $region47: #{tpu_custom_call.1} parent=5 // pred_region
        %s915 = ssub.s32 %s14, 2
        // Predicated region
        $region49: #{tpu_custom_call.1} parent=47 // pred_check
          %p916 = pneg %p132
        $region50: #{tpu_custom_call.1} parent=47 // pred_check_branch
          %918 = sbr.rel (%p916) target = $region52
        $region51: #{tpu_custom_call.1} parent=47 // pred_region
          %s919 = sand.u32 %s117, 1
          %s920 = scalar_lea.sflag [#allocation4], %s919
          %s921 = sand.u32 %s117, 1
          %s922 = smul.addr %s921, 72
          %s923 = scalar_lea.vmem [#allocation5], %s922
          %924 = dma.done %s920, 1152
        $region52: #{tpu_custom_call.1} parent=47 // pred_fallthru
          _
      $region48: #{tpu_custom_call.1} parent=5 // pred_fallthru
        _
    $region6: #{tpu_custom_call.1} parent=1 // loop_footer
      %s18 = sadd.s32 1, %s14
    $region7: #{tpu_custom_call.1} parent=1 // loop_footer_branch
      %13 = sbr.rel target = $region3
    $region8: #{tpu_custom_call.1} parent=1 // loop_exit
      _
    %925 = vsyncpa [#allocation3], 1
    %s926 = scalar_lea.sflag [#allocation3], 1
    %927 = vsyncpa %s926, 1
    %928 = vsyncpa [#allocation4], 1
    %s929 = scalar_lea.sflag [#allocation4], 1
    %930 = vsyncpa %s929, 1

</llo_original>
